<compile_context>
chip_gen: v7x
topology: tpu7x:2x2x1
jax: 0.10.0
libtpu: 0.0.40
codegen_flags: <defaults>
</compile_context>

<pallas_src>
import functools

import jax
import jax.numpy as jnp
from jax.experimental import pallas as pl
from jax.experimental.pallas import tpu as pltpu

LAYER_NORM_EPS = 1e-12


def _round_up(x, m):
    return (x + m - 1) // m * m


def _self_output_kernel(hs_ref, inp_ref, w_ref, b_ref, gamma_ref, beta_ref, out_ref):
    # hs_ref / inp_ref / out_ref : (tm, H)
    # w_ref : (H, H) in PyTorch [out, in] layout (NOT transposed in the wrapper)
    # b_ref / gamma_ref / beta_ref : (1, H)

    # Linear: y = x @ W^T + b.  Contract dim 1 of hs with dim 1 of W ([out, in]),
    # feeding native-dtype operands to the MXU and accumulating in f32.
    y = jax.lax.dot_general(
        hs_ref[...],
        w_ref[...],
        dimension_numbers=(((1,), (1,)), ((), ())),
        preferred_element_type=jnp.float32,
    )
    y = y + b_ref[...].astype(jnp.float32)

    # Dropout (eval mode) == identity, then residual add.
    z = y + inp_ref[...].astype(jnp.float32)

    # LayerNorm over the hidden axis (f32 math).
    mean = jnp.mean(z, axis=-1, keepdims=True)
    zc = z - mean
    var = jnp.mean(zc * zc, axis=-1, keepdims=True)
    inv = jax.lax.rsqrt(var + LAYER_NORM_EPS)
    out = zc * inv * gamma_ref[...].astype(jnp.float32) + beta_ref[...].astype(jnp.float32)

    out_ref[...] = out.astype(out_ref.dtype)


@functools.partial(jax.jit, static_argnames=("block_rows",))
def bert_self_output(hidden_states, input_tensor, weight, bias, gamma, beta,
                     block_rows=512):
    """hidden_states, input_tensor: [B, S, H]; weight: [H, H] (PyTorch [out, in])."""
    B, S, H = hidden_states.shape
    rows = B * S
    act_dtype = hidden_states.dtype

    # Row tile: large (MXU-filling, amortizes per-step overhead), 16-row aligned
    # (covers bf16 sublane packing and f32 (8,128) tiling), clamped to the problem
    # size so tiny inputs don't over-pad.
    tm = max(16, min(block_rows, _round_up(rows, 16)))
    padded_rows = _round_up(rows, tm)
    pad = padded_rows - rows

    hs2d = hidden_states.reshape(rows, H)
    in2d = input_tensor.reshape(rows, H)
    if pad:
        hs2d = jnp.pad(hs2d, ((0, pad), (0, 0)))
        in2d = jnp.pad(in2d, ((0, pad), (0, 0)))

    b2d = bias.reshape(1, H)
    g2d = gamma.reshape(1, H)
    be2d = beta.reshape(1, H)

    grid = (padded_rows // tm,)

    # Explicit VMEM budget: double-buffered hs/inp/out tiles, weight (default 2
    # pipeline buffers even though it is only DMA'd once), f32 working set for the
    # LayerNorm math, plus 1.5x headroom.  Capped at 64 MiB so it is valid on v7x.
    act_itemsize = jnp.dtype(act_dtype).itemsize
    w_itemsize = jnp.dtype(weight.dtype).itemsize
    est = (
        3 * 2 * tm * H * act_itemsize   # hs, inp, out (double-buffered)
        + 2 * H * H * w_itemsize        # weight (pipeline buffers; fetched once)
        + 4 * tm * H * 4                # f32 intermediates inside the kernel
        + 6 * 2 * H * 4                 # bias / gamma / beta
    )
    vmem_limit = max(32 * 1024 * 1024, min(64 * 1024 * 1024, int(est * 1.5)))

    out2d = pl.pallas_call(
        _self_output_kernel,
        out_shape=jax.ShapeDtypeStruct((padded_rows, H), act_dtype),
        grid_spec=pltpu.PrefetchScalarGridSpec(
            num_scalar_prefetch=0,
            grid=grid,
            in_specs=[
                pl.BlockSpec((tm, H), lambda i: (i, 0)),   # hidden_states tile
                pl.BlockSpec((tm, H), lambda i: (i, 0)),   # input_tensor tile
                pl.BlockSpec((H, H), lambda i: (0, 0)),    # weight (constant idx -> DMA'd once)
                pl.BlockSpec((1, H), lambda i: (0, 0)),    # bias
                pl.BlockSpec((1, H), lambda i: (0, 0)),    # gamma
                pl.BlockSpec((1, H), lambda i: (0, 0)),    # beta
            ],
            out_specs=pl.BlockSpec((tm, H), lambda i: (i, 0)),
        ),
        compiler_params=pltpu.CompilerParams(
            dimension_semantics=("parallel",),
            vmem_limit_bytes=vmem_limit,
        ),
    )(hs2d, in2d, weight, b2d, g2d, be2d)

    return out2d[:rows].reshape(B, S, H)


def _reference(hidden_states, input_tensor, weight, bias, gamma, beta):
    y = jnp.einsum("bsh,oh->bso", hidden_states, weight) + bias
    z = y + input_tensor
    mean = jnp.mean(z, axis=-1, keepdims=True)
    var = jnp.mean((z - mean) ** 2, axis=-1, keepdims=True)
    return (z - mean) * jax.lax.rsqrt(var + LAYER_NORM_EPS) * gamma + beta


def _make_inputs(key, B, S, H, dtype=jnp.float32):
    k_hs, k_in, k_w, k_b, k_g, k_be = jax.random.split(key, 6)
    hidden_states = jax.random.normal(k_hs, (B, S, H), dtype=dtype)
    input_tensor = jax.random.normal(k_in, (B, S, H), dtype=dtype)
    # nn.Linear(H, H): weight [out, in], bias [out]
    weight = jax.random.normal(k_w, (H, H), dtype=dtype) * 0.02
    bias = jax.random.normal(k_b, (H,), dtype=dtype) * 0.02
    gamma = jnp.ones((H,), dtype=dtype) + 0.01 * jax.random.normal(k_g, (H,), dtype=dtype)
    beta = 0.01 * jax.random.normal(k_be, (H,), dtype=dtype)
    return hidden_states, input_tensor, weight, bias, gamma, beta


if __name__ == "__main__":
    key = jax.random.PRNGKey(0)
    k1, k2 = jax.random.split(key)

    # Small shape consistent with the module (batch=2, seq=8, hidden=32).
    hs, it, w, b, g, be = _make_inputs(k1, B=2, S=8, H=32)
    out = bert_self_output(hs, it, w, b, g, be)
    out = jax.block_until_ready(out)
    ref = _reference(hs, it, w, b, g, be)
    assert jnp.allclose(out, ref, atol=1e-5, rtol=1e-5), "mismatch vs reference (small)"

    # Second check exercising multi-step tiling + row padding (rows=600 not a
    # multiple of the 256-row tile) and a lane-dense hidden dim.
    hs2, it2, w2, b2, g2, be2 = _make_inputs(k2, B=2, S=300, H=128)
    out2 = bert_self_output(hs2, it2, w2, b2, g2, be2, block_rows=256)
    out2 = jax.block_until_ready(out2)
    ref2 = _reference(hs2, it2, w2, b2, g2, be2)
    assert jnp.allclose(out2, ref2, atol=1e-4, rtol=1e-4), "mismatch vs reference (tiled)"

    print("KERNEL_OK")
</pallas_src>

<mosaic_0001>
module attributes {stable_mosaic.version = 11 : i64} {
  func.func @_self_output_kernel(%arg0: i32, %arg1: memref<16x32xf32, #tpu.memory_space<vmem>>, %arg2: memref<16x32xf32, #tpu.memory_space<vmem>>, %arg3: memref<32x32xf32, #tpu.memory_space<vmem>>, %arg4: memref<1x32xf32, #tpu.memory_space<vmem>>, %arg5: memref<1x32xf32, #tpu.memory_space<vmem>>, %arg6: memref<1x32xf32, #tpu.memory_space<vmem>>, %arg7: memref<16x32xf32, #tpu.memory_space<vmem>>) attributes {dimension_semantics = [#tpu.dimension_semantics<parallel>], iteration_bounds = array<i64: 1>, scalar_prefetch = 0 : i64, scratch_operands = 0 : i64, tpu.core_type = #tpu.core_type<tc>, window_params = [{transform_indices = @transform_0, window_bounds = array<i64: 16, 32>}, {transform_indices = @transform_1, window_bounds = array<i64: 16, 32>}, {pipeline_mode = #tpu.pipeline_mode<synchronous>, transform_indices = @transform_2, window_bounds = array<i64: 32, 32>}, {pipeline_mode = #tpu.pipeline_mode<synchronous>, transform_indices = @transform_3, window_bounds = array<i64: 1, 32>}, {pipeline_mode = #tpu.pipeline_mode<synchronous>, transform_indices = @transform_4, window_bounds = array<i64: 1, 32>}, {pipeline_mode = #tpu.pipeline_mode<synchronous>, transform_indices = @transform_5, window_bounds = array<i64: 1, 32>}, {transform_indices = @transform_6, window_bounds = array<i64: 16, 32>}]} {
    %c0 = arith.constant 0 : index
    %c0_0 = arith.constant 0 : index
    %0 = vector.load %arg1[%c0, %c0_0] : memref<16x32xf32, #tpu.memory_space<vmem>>, vector<16x32xf32>
    %c0_1 = arith.constant 0 : index
    %c0_2 = arith.constant 0 : index
    %1 = vector.load %arg3[%c0_1, %c0_2] : memref<32x32xf32, #tpu.memory_space<vmem>>, vector<32x32xf32>
    %cst = arith.constant dense<0.000000e+00> : vector<16x32xf32>
    %2 = tpu.matmul %0, %1, %cst {dimension_numbers = #tpu.dot_dimension_numbers<[1], [1], [0], [0], [0, 0, 1, 0], [], []>} : vector<16x32xf32>, vector<32x32xf32>, vector<16x32xf32> -> vector<16x32xf32>
    %c0_3 = arith.constant 0 : index
    %c0_4 = arith.constant 0 : index
    %3 = vector.load %arg4[%c0_3, %c0_4] : memref<1x32xf32, #tpu.memory_space<vmem>>, vector<1x32xf32>
    %4 = vector.broadcast %3 : vector<1x32xf32> to vector<16x32xf32>
    %5 = arith.addf %2, %4 : vector<16x32xf32>
    %c0_5 = arith.constant 0 : index
    %c0_6 = arith.constant 0 : index
    %6 = vector.load %arg2[%c0_5, %c0_6] : memref<16x32xf32, #tpu.memory_space<vmem>>, vector<16x32xf32>
    %7 = arith.addf %5, %6 : vector<16x32xf32>
    %cst_7 = arith.constant dense<0.000000e+00> : vector<16xf32>
    %8 = vector.multi_reduction <add>, %7, %cst_7 [1] : vector<16x32xf32> to vector<16xf32>
    %9 = vector.shape_cast %8 : vector<16xf32> to vector<16x1xf32>
    %cst_8 = arith.constant 3.200000e+01 : f32
    %10 = vector.broadcast %cst_8 : f32 to vector<16x1xf32>
    %11 = arith.divf %9, %10 : vector<16x1xf32>
    %12 = vector.broadcast %11 : vector<16x1xf32> to vector<16x32xf32>
    %13 = arith.subf %7, %12 : vector<16x32xf32>
    %14 = arith.mulf %13, %13 : vector<16x32xf32>
    %cst_9 = arith.constant dense<0.000000e+00> : vector<16xf32>
    %15 = vector.multi_reduction <add>, %14, %cst_9 [1] : vector<16x32xf32> to vector<16xf32>
    %16 = vector.shape_cast %15 : vector<16xf32> to vector<16x1xf32>
    %cst_10 = arith.constant 3.200000e+01 : f32
    %17 = vector.broadcast %cst_10 : f32 to vector<16x1xf32>
    %18 = arith.divf %16, %17 : vector<16x1xf32>
    %cst_11 = arith.constant 9.99999996E-13 : f32
    %19 = vector.broadcast %cst_11 : f32 to vector<16x1xf32>
    %20 = arith.addf %18, %19 : vector<16x1xf32>
    %21 = math.rsqrt %20 : vector<16x1xf32>
    %22 = vector.broadcast %21 : vector<16x1xf32> to vector<16x32xf32>
    %23 = arith.mulf %13, %22 : vector<16x32xf32>
    %c0_12 = arith.constant 0 : index
    %c0_13 = arith.constant 0 : index
    %24 = vector.load %arg5[%c0_12, %c0_13] : memref<1x32xf32, #tpu.memory_space<vmem>>, vector<1x32xf32>
    %25 = vector.broadcast %24 : vector<1x32xf32> to vector<16x32xf32>
    %26 = arith.mulf %23, %25 : vector<16x32xf32>
    %c0_14 = arith.constant 0 : index
    %c0_15 = arith.constant 0 : index
    %27 = vector.load %arg6[%c0_14, %c0_15] : memref<1x32xf32, #tpu.memory_space<vmem>>, vector<1x32xf32>
    %28 = vector.broadcast %27 : vector<1x32xf32> to vector<16x32xf32>
    %29 = arith.addf %26, %28 : vector<16x32xf32>
    %c0_16 = arith.constant 0 : index
    %c0_17 = arith.constant 0 : index
    %30 = vector.load %arg7[%c0_16, %c0_17] : memref<16x32xf32, #tpu.memory_space<vmem>>, vector<16x32xf32>
    tpu.vector_store %arg7[%c0_16, %c0_17], %29 {strides = array<i32>} : memref<16x32xf32, #tpu.memory_space<vmem>>, vector<16x32xf32>,
    return
  }
  func.func @transform_0(%arg0: i32) -> (i32, i32) {
    %c0_i32 = arith.constant 0 : i32
    %c0_i32_0 = arith.constant 0 : i32
    return %arg0, %c0_i32 : i32, i32
  }
  func.func @transform_1(%arg0: i32) -> (i32, i32) {
    %c0_i32 = arith.constant 0 : i32
    %c0_i32_0 = arith.constant 0 : i32
    return %arg0, %c0_i32 : i32, i32
  }
  func.func @transform_2(%arg0: i32) -> (i32, i32) {
    %c0_i32 = arith.constant 0 : i32
    %c0_i32_0 = arith.constant 0 : i32
    %c0_i32_1 = arith.constant 0 : i32
    return %c0_i32, %c0_i32_0 : i32, i32
  }
  func.func @transform_3(%arg0: i32) -> (i32, i32) {
    %c0_i32 = arith.constant 0 : i32
    %c0_i32_0 = arith.constant 0 : i32
    %c0_i32_1 = arith.constant 0 : i32
    return %c0_i32, %c0_i32_0 : i32, i32
  }
  func.func @transform_4(%arg0: i32) -> (i32, i32) {
    %c0_i32 = arith.constant 0 : i32
    %c0_i32_0 = arith.constant 0 : i32
    %c0_i32_1 = arith.constant 0 : i32
    return %c0_i32, %c0_i32_0 : i32, i32
  }
  func.func @transform_5(%arg0: i32) -> (i32, i32) {
    %c0_i32 = arith.constant 0 : i32
    %c0_i32_0 = arith.constant 0 : i32
    %c0_i32_1 = arith.constant 0 : i32
    return %c0_i32, %c0_i32_0 : i32, i32
  }
  func.func @transform_6(%arg0: i32) -> (i32, i32) {
    %c0_i32 = arith.constant 0 : i32
    %c0_i32_0 = arith.constant 0 : i32
    return %arg0, %c0_i32 : i32, i32
  }
}

</mosaic_0001>

<llo_original>
// kernel: bert_self_output.1
$region0: #{bert_self_output.1}
  #allocation0 [shape = 'u32[]', space=smem, size = 0x4, offset = 0x4, fixed_abs, tag = 'smem constant byte address 0x4 - core index']
  #allocation1 [shape = 'u32[144,128]{1,0:T(1,128)}', space=vmem, size = 0x12000, scoped, tag = 'internal scratch']
  %s0 = inlined_call_operand.vmem [shape: f32[16,32], index: 0, kind: input, shape index: {}]
  %s1 = inlined_call_operand.hbm [shape: f32[16,32], index: 1, kind: input, shape index: {}]
  %s2 = inlined_call_operand.hbm [shape: f32[32,32], index: 2, kind: input, shape index: {}]
  %s3 = inlined_call_operand.vmem [shape: f32[1,32], index: 3, kind: input, shape index: {}]
  %s4 = inlined_call_operand.vmem [shape: f32[1,32], index: 4, kind: input, shape index: {}]
  %s5 = inlined_call_operand.vmem [shape: f32[1,32], index: 5, kind: input, shape index: {}]
  %s6 = inlined_call_operand.hbm [shape: f32[16,32], index: 6, kind: output, shape index: {}]
  %s7 = sld [smem:[#allocation0]]
  $region42: #{bert_self_output.1} parent=0
    _
  %s9 = ssub.s32 1, %s7
  %s10 = scalar_select 0, %s9, %s7
  $region1: #{bert_self_output.1} parent=0
    #allocation2 [shape = 'u8[8192]{0}', space=vmem, size = 0x2000, scoped, tag = 'input window, operand 1, single buffered']
    #allocation3 [shape = 's32[1]{0}', space=sflag, size = 0x4, scoped, tag = 'scoped memory for bert_self_output.1']
    #allocation4 [shape = 's32[1]{0}', space=sflag, size = 0x4, scoped, tag = 'scoped memory for bert_self_output.1']
    #allocation5 [shape = 'u8[16384]{0}', space=vmem, size = 0x4000, scoped, tag = 'input window, operand 2, single buffered']
    #allocation6 [shape = 's32[1]{0}', space=sflag, size = 0x4, scoped, tag = 'scoped memory for bert_self_output.1']
    #allocation7 [shape = 'u8[8192]{0}', space=vmem, size = 0x2000, scoped, tag = 'output window, operand 0, single buffered']
    %11 = vsyncpa [#allocation3], 0
    %12 = vsyncpa [#allocation6], 0
    %13 = vsyncpa [#allocation4], 0
    // Predicated region
    $region2: #{bert_self_output.1} parent=1 // pred_check
      _
    $region3: #{bert_self_output.1} parent=1 // pred_check_branch
      %15 = sbr.rel (0) target = $region5
    $region4: #{bert_self_output.1} parent=1 // pred_region
      _
    $region5: #{bert_self_output.1} parent=1 // pred_fallthru
      _
    // Predicated region
    $region6: #{bert_self_output.1} parent=1 // pred_check
      _
    $region7: #{bert_self_output.1} parent=1 // pred_check_branch
      %17 = sbr.rel (0) target = $region9
    $region8: #{bert_self_output.1} parent=1 // pred_region
      %s19 = ssub.s32 256, 256
      %20 = vsyncadd [#allocation3], %s19
      %s21 = sshll.u32 [#allocation2], 4
      %s22 = int_to_ptr.vmem [resolvable:$true] %s21
      %27 = dma.hbm_to_vmem [thread:$0]  %s1, 256, %s22, [#allocation3], 128, 128, 8
    $region9: #{bert_self_output.1} parent=1 // pred_fallthru
      _
    // Predicated region
    $region10: #{bert_self_output.1} parent=1 // pred_check
      _
    $region11: #{bert_self_output.1} parent=1 // pred_check_branch
      %29 = sbr.rel (0) target = $region13
    $region12: #{bert_self_output.1} parent=1 // pred_region
      %s31 = ssub.s32 512, 512
      %32 = vsyncadd [#allocation6], %s31
      %s33 = sshll.u32 [#allocation5], 4
      %s34 = int_to_ptr.vmem [resolvable:$true] %s33
      %39 = dma.hbm_to_vmem [thread:$0]  %s2, 512, %s34, [#allocation6], 128, 128, 8
    $region13: #{bert_self_output.1} parent=1 // pred_fallthru
      _
    // Predicated region
    $region14: #{bert_self_output.1} parent=1 // pred_check
      _
    $region15: #{bert_self_output.1} parent=1 // pred_check_branch
      %41 = sbr.rel (0) target = $region17
    $region16: #{bert_self_output.1} parent=1 // pred_region
      _
    $region17: #{bert_self_output.1} parent=1 // pred_fallthru
      _
    // Predicated region
    $region18: #{bert_self_output.1} parent=1 // pred_check
      _
    $region19: #{bert_self_output.1} parent=1 // pred_check_branch
      %43 = sbr.rel (0) target = $region21
    $region20: #{bert_self_output.1} parent=1 // pred_region
      _
    $region21: #{bert_self_output.1} parent=1 // pred_fallthru
      _
    // Predicated region
    $region22: #{bert_self_output.1} parent=1 // pred_check
      _
    $region23: #{bert_self_output.1} parent=1 // pred_check_branch
      %45 = sbr.rel (0) target = $region25
    $region24: #{bert_self_output.1} parent=1 // pred_region
      _
    $region25: #{bert_self_output.1} parent=1 // pred_fallthru
      _
    // Predicated region
    $region26: #{bert_self_output.1} parent=1 // pred_check
      _
    $region27: #{bert_self_output.1} parent=1 // pred_check_branch
      %47 = sbr.rel (0) target = $region29
    $region28: #{bert_self_output.1} parent=1 // pred_region
      %48 = dma.done [#allocation3], 256
    $region29: #{bert_self_output.1} parent=1 // pred_fallthru
      _
    // Predicated region
    $region30: #{bert_self_output.1} parent=1 // pred_check
      _
    $region31: #{bert_self_output.1} parent=1 // pred_check_branch
      %50 = sbr.rel (0) target = $region33
    $region32: #{bert_self_output.1} parent=1 // pred_region
      %51 = dma.done [#allocation6], 512
    $region33: #{bert_self_output.1} parent=1 // pred_fallthru
      _
    %v52 = vld [vmem:[%s0] sm:$0xff]
    %v53 = vld [vmem:[%s0 + $0x8] sm:$0xff]
    %v54 = vld [vmem:[#allocation5] sm:$0xff]
    %v55 = vld [vmem:[#allocation5 + $0x8] sm:$0xff]
    %v56 = vld [vmem:[#allocation5 + $0x10] sm:$0xff]
    %v57 = vld [vmem:[#allocation5 + $0x18] sm:$0xff]
    %v58 = vld [vmem:[%s3] sm:$0x1]
    %v60 = vlaneseq
    %v61 = vshrl.u32 %v60, 7
    %v62 = vsub.s32 0, %v61
    %v63 = vrot.slane %v58, %v62
    %vm65 = vcmask 261120
    %v67 = vsel %vm65, %v52, 0
    %v70 = vsel %vm65, %v53, 0
    %v73 = vsel %vm65, %v54, 0
    %v76 = vsel %vm65, %v55, 0
    %v79 = vsel %vm65, %v56, 0
    %v82 = vsel %vm65, %v57, 0
    %84 = vmatprep.subr.mxu0 0.0
    %85 = vmatpush1.xpose.msra.mxu0 %v73
    %86 = vmatprep.subr.mxu0 0.0
    %87 = vmatpush1.xpose.msra.mxu0 %v76
    %88 = vmatprep.subr.mxu0 0.0
    %89 = vmatpush1.xpose.msra.mxu0 %v79
    %90 = vmatprep.subr.mxu0 0.0
    %91 = vmatpush1.xpose.msra.mxu0 %v82
    %92 = vmatprep.subr.mxu0 0.0
    %93 = vmatpush1.xpose.msra.mxu0 0.0
    %94 = vmatprep.subr.mxu0 0.0
    %95 = vmatpush1.xpose.msra.mxu0 0.0
    %96 = vmatprep.subr.mxu0 0.0
    %97 = vmatpush1.xpose.msra.mxu0 0.0
    %98 = vmatprep.subr.mxu0 0.0
    %99 = vmatpush1.xpose.msra.mxu0 0.0
    %100 = vmatprep.subr.mxu0 0.0
    %101 = vmatpush1.xpose.msra.mxu0 0.0
    %102 = vmatprep.subr.mxu0 0.0
    %103 = vmatpush1.xpose.msra.mxu0 0.0
    %104 = vmatprep.subr.mxu0 0.0
    %105 = vmatpush1.xpose.msra.mxu0 0.0
    %106 = vmatprep.subr.mxu0 0.0
    %107 = vmatpush1.xpose.msra.mxu0 0.0
    %108 = vmatprep.subr.mxu0 0.0
    %109 = vmatpush1.xpose.msra.mxu0 0.0
    %110 = vmatprep.subr.mxu0 0.0
    %111 = vmatpush1.xpose.msra.mxu0 0.0
    %112 = vmatprep.subr.mxu0 0.0
    %113 = vmatpush1.xpose.msra.mxu0 0.0
    %114 = vmatprep.subr.mxu0 0.0
    %115 = vmatpush1.xpose.msra.mxu0 0.0
    %116 = vmatprep.subr.mxu0 0.0
    %117 = vmatpush1.xpose.msra.mxu0 0.0
    %118 = vmatprep.subr.mxu0 0.0
    %119 = vmatpush1.xpose.msra.mxu0 0.0
    %120 = vmatprep.subr.mxu0 0.0
    %121 = vmatpush1.xpose.msra.mxu0 0.0
    %122 = vmatprep.subr.mxu0 0.0
    %123 = vmatpush1.xpose.msra.mxu0 0.0
    %124 = vmatprep.subr.mxu0 0.0
    %125 = vmatpush1.xpose.msra.mxu0 0.0
    %126 = vmatprep.subr.mxu0 0.0
    %127 = vmatpush1.xpose.msra.mxu0 0.0
    %128 = vmatprep.subr.mxu0 0.0
    %129 = vmatpush1.xpose.msra.mxu0 0.0
    %130 = vmatprep.subr.mxu0 0.0
    %131 = vmatpush1.xpose.msra.mxu0 0.0
    %132 = vmatprep.subr.mxu0 0.0
    %133 = vmatpush1.xpose.msra.mxu0 0.0
    %134 = vmatprep.subr.mxu0 0.0
    %135 = vmatpush1.xpose.msra.mxu0 0.0
    %136 = vmatprep.subr.mxu0 0.0
    %137 = vmatpush1.xpose.msra.mxu0 0.0
    %138 = vmatprep.subr.mxu0 0.0
    %139 = vmatpush1.xpose.msra.mxu0 0.0
    %140 = vmatprep.subr.mxu0 0.0
    %141 = vmatpush1.xpose.msra.mxu0 0.0
    %142 = vmatprep.subr.mxu0 0.0
    %143 = vmatpush1.xpose.msra.mxu0 0.0
    %144 = vmatprep.subr.mxu0 0.0
    %145 = vmatpush1.xpose.msra.mxu0 0.0
    %146 = vmatprep.subr.mxu0 0.0
    %147 = vmatpush1.xpose.msra.mxu0 0.0
    %148 = vmatprep.mubr.f32.mxu0 0.0
    %149 = vmatmul.mubr.f32.gmra.mrb[0].mxu0 %v67
    %v150 = vpop.f32.mrb[0].mxu0
    %v151 = vadd.f32 %v63, %v150
    %v152 = vpop.f32.mrb[0].mxu0
    %153 = vmatprep.mubr.f32.mxu0 0.0
    %154 = vmatmul.mubr.f32.gmra.mrb[0].mxu0 %v70
    %v155 = vpop.f32.mrb[0].mxu0
    %v156 = vadd.f32 %v63, %v155
    %v157 = vpop.f32.mrb[0].mxu0
    %158 = vdwg.mxu0
    %v159 = vld [vmem:[#allocation2] sm:$0xff]
    %v160 = vld [vmem:[#allocation2 + $0x8] sm:$0xff]
    %v161 = vadd.f32 %v151, %v159
    %v162 = vadd.f32 %v156, %v160
    %v163 = vsel %vm65, %v161, 0.0
    %164 = vadd.xlane.f32.xlu0 %v163
    %v165 = vpop.xlane.xlu0 %164
    %v166 = vsel %vm65, %v162, 0.0
    %167 = vadd.xlane.f32.xlu0 %v166
    %v168 = vpop.xlane.xlu0 %167
    %v169 = vrcp.pop 32.0
    %v170 = vmul.f32 %v165, %v169
    %v171 = vmul.f32 %v168, %v169
    %v172 = vsub.f32 %v161, %v170
    %v173 = vsub.f32 %v162, %v171
    %v174 = vmul.f32 %v172, %v172
    %v175 = vmul.f32 %v173, %v173
    %v176 = vsel %vm65, %v174, 0.0
    %177 = vadd.xlane.f32.xlu0 %v176
    %v178 = vpop.xlane.xlu0 %177
    %v179 = vsel %vm65, %v175, 0.0
    %180 = vadd.xlane.f32.xlu0 %v179
    %v181 = vpop.xlane.xlu0 %180
    %v182 = vmul.f32 %v178, %v169
    %v183 = vmul.f32 %v181, %v169
    %v184 = vadd.f32 %v182, 1e-12
    %v185 = vadd.f32 %v183, 1e-12
    %v186 = vrsqrt.pop %v184
    %v187 = vrsqrt.pop %v185
    %v188 = vmul.f32 %v172, %v186
    %v189 = vmul.f32 %v173, %v187
    %v190 = vld [vmem:[%s4] sm:$0x1]
    %v192 = vlaneseq
    %v193 = vshrl.u32 %v192, 7
    %v194 = vsub.s32 0, %v193
    %v195 = vrot.slane %v190, %v194
    %v197 = vmul.f32 %v188, %v195
    %v198 = vmul.f32 %v189, %v195
    %v199 = vld [vmem:[%s5] sm:$0x1]
    %v201 = vlaneseq
    %v202 = vshrl.u32 %v201, 7
    %v203 = vsub.s32 0, %v202
    %v204 = vrot.slane %v199, %v203
    %v206 = vadd.f32 %v197, %v204
    %v207 = vadd.f32 %v198, %v204
    %208 = vst.msk [vmem:[#allocation7] sm:$0xff] %vm65, %v206
    %209 = vst.msk [vmem:[#allocation7 + $0x8] sm:$0xff] %vm65, %v207
    // Predicated region
    $region34: #{bert_self_output.1} parent=1 // pred_check
      _
    $region35: #{bert_self_output.1} parent=1 // pred_check_branch
      %211 = sbr.rel (0) target = $region37
    $region36: #{bert_self_output.1} parent=1 // pred_region
      %s213 = ssub.s32 256, 256
      %214 = vsyncadd [#allocation4], %s213
      %s215 = sshll.u32 [#allocation7], 4
      %s216 = int_to_ptr.vmem [resolvable:$true] %s215
      %221 = dma.vmem_to_hbm [thread:$0]  %s216, 256, %s6, [#allocation4], 128, 128, 8
    $region37: #{bert_self_output.1} parent=1 // pred_fallthru
      _
    // Predicated region
    $region38: #{bert_self_output.1} parent=1 // pred_check
      _
    $region39: #{bert_self_output.1} parent=1 // pred_check_branch
      %223 = sbr.rel (0) target = $region41
    $region40: #{bert_self_output.1} parent=1 // pred_region
      %224 = dma.done [#allocation4], 256
    $region41: #{bert_self_output.1} parent=1 // pred_fallthru
      _
    %225 = vsyncpa [#allocation3], 1
    %226 = vsyncpa [#allocation6], 1
    %227 = vsyncpa [#allocation4], 1

</llo_original>
